<compile_context>
chip_gen: v6e
topology: v6e:2x2x1
jax: 0.10.0
libtpu: 0.0.40
codegen_flags: <defaults>
</compile_context>

<pallas_src>
import functools

import jax
import jax.numpy as jnp
from jax.experimental import pallas as pl
from jax.experimental.pallas import tpu as pltpu


def _round_up(v, m):
    return -(-v // m) * m


def _channel_attention_kernel(x_ref, w1_ref, w2_ref, o_ref, sum_ref, max_ref,
                              *, L, L_TILE, H, needs_mask):
    # x_ref:   (B_TILE, C, L_TILE)  input tile in native NCL layout (L on lanes)
    # w1_ref:  (C, H)               first 1x1-conv weight, pre-transposed
    # w2_ref:  (H, C)               second 1x1-conv weight, pre-transposed
    # o_ref:   (B_TILE, C)          sigmoid(fc(avg) + fc(max))
    # sum_ref / max_ref: (B_TILE, C) f32 running accumulators (VMEM scratch)
    k = pl.program_id(1)
    last = pl.num_programs(1) - 1

    @pl.when(k == 0)
    def _init():
        sum_ref[...] = jnp.zeros_like(sum_ref)
        max_ref[...] = jnp.full_like(max_ref, -jnp.inf)

    x = x_ref[...]  # keep input dtype; no full f32 materialization of the tile

    def _accumulate(x_sum, x_max):
        # Reduce over L (lane axis): vreg-wise adds/maxes (VALU) plus a small
        # cross-lane tail (XLU); accumulate in f32 scratch.
        sum_ref[...] += jnp.sum(x_sum, axis=2, dtype=jnp.float32)
        max_ref[...] = jnp.maximum(
            max_ref[...], jnp.max(x_max, axis=2).astype(jnp.float32))

    if needs_mask:
        # Hot path: full tiles skip the mask entirely.
        @pl.when(k < last)
        def _acc_full():
            _accumulate(x, x)

        # Only the ragged last L tile pays for iota + compare + selects.
        @pl.when(k == last)
        def _acc_masked():
            valid = (jax.lax.broadcasted_iota(jnp.int32, x.shape, 2)
                     < (L - k * L_TILE))
            if jnp.issubdtype(x.dtype, jnp.floating):
                lowest = jnp.array(-jnp.inf, x.dtype)
            else:
                lowest = jnp.array(jnp.iinfo(x.dtype).min, x.dtype)
            _accumulate(jnp.where(valid, x, jnp.zeros_like(x)),
                        jnp.where(valid, x, lowest))
    else:
        _accumulate(x, x)

    @pl.when(k == last)
    def _finalize():
        avg = sum_ref[...] * (1.0 / L)                 # (B_TILE, C)
        mx = max_ref[...]                              # (B_TILE, C)
        w1 = w1_ref[...].astype(jnp.float32)           # (C, H)
        # fc(avg) + fc(max): the second 1x1 conv is linear, so sum the hidden
        # activations and apply w2 once (no concatenate / relayout needed).
        h = (jnp.maximum(jnp.dot(avg, w1, preferred_element_type=jnp.float32), 0.0)
             + jnp.maximum(jnp.dot(mx, w1, preferred_element_type=jnp.float32), 0.0))
        w2 = w2_ref[...].astype(jnp.float32)           # (H, C)
        if H <= 8:
            # H = C // ratio is tiny: do the H-contraction as VPU
            # broadcast-FMAs on the lane-dense (B_TILE, C) slab.
            out = h[:, 0:1] * w2[0:1, :]
            for hh in range(1, H):
                out = out + h[:, hh:hh + 1] * w2[hh:hh + 1, :]
        else:
            out = jnp.dot(h, w2, preferred_element_type=jnp.float32)
        # NOTE: a partial final B tile carries OOB-padded garbage rows here;
        # those rows are discarded by the clipped output writeback.
        o_ref[...] = jax.nn.sigmoid(out).astype(o_ref.dtype)


def _tile_defaults():
    """(x_tile_bytes, scoped_vmem_cap) chosen by TPU generation."""
    mib = 1024 * 1024
    try:
        kind = jax.devices()[0].device_kind.lower()
    except Exception:
        kind = ""
    if any(tag in kind for tag in ("v4", "v5", "v6", "trillium")):
        # 128 MiB physical VMEM: fatter tiles, fewer ~0.35us grid steps.
        return 24 * mib, 96 * mib
    # v7x (64 MiB VMEM per TensorCore) and unknown parts: stay conservative.
    return 12 * mib, 44 * mib


def channel_attention(x, w1, w2, *, x_tile_bytes=None, vmem_limit_bytes=None):
    """ChannelAttention forward.

    x:  (B, C, L)  activations (PyTorch Conv1d NCL layout, consumed as-is)
    w1: (H, C)     Conv1d(C -> H, kernel_size=1, bias=False) weight (squeezed)
    w2: (C, H)     Conv1d(H -> C, kernel_size=1, bias=False) weight (squeezed)
    Returns (B, C, 1) sigmoid attention weights, dtype of x.
    """
    B, C, L = x.shape
    H = w1.shape[0]
    assert w1.shape == (H, C) and w2.shape == (C, H)

    default_tile, default_cap = _tile_defaults()
    if x_tile_bytes is None:
        x_tile_bytes = default_tile

    # Weights pre-transposed once (tiny); x stays in native NCL layout.
    w1t = jnp.transpose(w1)                            # (C, H)
    w2t = jnp.transpose(w2)                            # (H, C)

    itemsize = jnp.dtype(x.dtype).itemsize
    sub_pack = max(8, 32 // itemsize)                  # sublane packing of C
    c_pad = _round_up(C, sub_pack)

    def lane_pad(n):
        return _round_up(n, 128)

    def pick_b_tile(rows_budget):
        # B_TILE must be full B or a multiple of 8 so the 2-D (B_TILE, C)
        # output block respects the (8,128) sublane rule.
        if rows_budget >= B:
            return B
        if rows_budget >= 8:
            return (rows_budget // 8) * 8
        return min(B, 8)        # may overshoot the byte budget slightly

    # ---- Tile selection: footprints use lane/sublane-PADDED sizes ----------
    f_row_full = c_pad * lane_pad(L) * itemsize        # one batch row, full L
    if f_row_full <= x_tile_bytes or lane_pad(L) <= 128:
        # Full-L tiles: no remainder masking ever.
        L_TILE = L
        needs_mask = False
        B_TILE = pick_b_tile(max(1, x_tile_bytes // f_row_full))
        # v7x megacore: prefer >= 2 "parallel" B tiles when that still yields
        # a legal (multiple-of-8) tile.
        # TODO(synk): for 2 <= B < 16 a 1-row split would engage v7x's second
        # TensorCore but needs a sub-8 sublane output block; skipped here.
        if B_TILE >= B and B >= 16:
            B_TILE = _round_up(-(-B // 2), 8)
    else:
        # L is long: small legal B tile, L tiled in 128-lane multiples.
        B_TILE = min(B, 8)
        max_l = max(128,
                    (x_tile_bytes // (B_TILE * c_pad * itemsize)) // 128 * 128)
        L_TILE = max_l
        if L % L_TILE != 0:
            # Prefer an L_TILE near the budget that divides L so even the last
            # tile skips the remainder mask.
            for cand in range(max_l, max(127, max_l // 2), -128):
                if L % cand == 0:
                    L_TILE = cand
                    break
        needs_mask = (L % L_TILE) != 0

    grid = (pl.cdiv(B, B_TILE), pl.cdiv(L, L_TILE))

    tile_bytes = B_TILE * c_pad * lane_pad(L_TILE) * itemsize
    if vmem_limit_bytes is None:
        # 2-deep buffering of the x tile + weights/accumulators/output + slack,
        # clamped to the generation's safe scoped-VMEM cap.
        vmem_limit_bytes = int(min(default_cap,
                                   max(32 * 1024 * 1024,
                                       2 * tile_bytes + 8 * 1024 * 1024)))

    kernel = functools.partial(
        _channel_attention_kernel,
        L=L, L_TILE=L_TILE, H=H, needs_mask=needs_mask)

    cost = pl.CostEstimate(
        flops=int(2 * B * C * L + 6 * B * C * H),
        transcendentals=int(B * C),
        bytes_accessed=int(B * C * L * itemsize + B * C * itemsize
                           + 2 * C * H * jnp.dtype(w1.dtype).itemsize),
    )

    out = pl.pallas_call(
        kernel,
        out_shape=jax.ShapeDtypeStruct((B, C), x.dtype),
        grid_spec=pltpu.PrefetchScalarGridSpec(
            num_scalar_prefetch=0,
            grid=grid,
            in_specs=[
                pl.BlockSpec((B_TILE, C, L_TILE), lambda b, k: (b, 0, k)),
                pl.BlockSpec((C, H), lambda b, k: (0, 0)),
                pl.BlockSpec((H, C), lambda b, k: (0, 0)),
            ],
            out_specs=pl.BlockSpec((B_TILE, C), lambda b, k: (b, 0)),
            scratch_shapes=[
                pltpu.VMEM((B_TILE, C), jnp.float32),   # running sum
                pltpu.VMEM((B_TILE, C), jnp.float32),   # running max
            ],
        ),
        compiler_params=pltpu.CompilerParams(
            dimension_semantics=("parallel", "arbitrary"),
            vmem_limit_bytes=int(vmem_limit_bytes),
        ),
        cost_estimate=cost,
    )(x, w1t, w2t)

    return out[:, :, None]                              # match PyTorch (B, C, 1)


def channel_attention_ref(x, w1, w2):
    """Pure-JAX reference mirroring the PyTorch forward."""
    xf = x.astype(jnp.float32)
    avg = jnp.mean(xf, axis=-1)
    mx = jnp.max(xf, axis=-1)

    def fc(v):
        h = jnp.maximum(v @ w1.astype(jnp.float32).T, 0.0)
        return h @ w2.astype(jnp.float32).T

    return jax.nn.sigmoid(fc(avg) + fc(mx))[:, :, None].astype(x.dtype)


if __name__ == "__main__":
    key = jax.random.PRNGKey(0)
    kx, k1, k2, kx2 = jax.random.split(key, 4)

    # Shapes consistent with the module: in_planes=32, ratio=16 -> hidden H=2.
    B, C, L = 2, 32, 16
    H = C // 16

    x = jax.random.normal(kx, (B, C, L), dtype=jnp.float32)
    w1 = jax.random.normal(k1, (H, C), dtype=jnp.float32) * (1.0 / jnp.sqrt(C))
    w2 = jax.random.normal(k2, (C, H), dtype=jnp.float32) * (1.0 / jnp.sqrt(max(H, 1)))

    out = jax.block_until_ready(channel_attention(x, w1, w2))
    ref = channel_attention_ref(x, w1, w2)
    assert out.shape == (B, C, 1), out.shape
    assert jnp.allclose(out, ref, atol=1e-5, rtol=1e-5), "mismatch vs reference"

    # Second check: a tiny byte budget forces L tiling (L_TILE=128 over L=320
    # -> 3 L tiles with a ragged last one), exercising the accumulator
    # init / unmasked hot path / masked last tile / finalize branches.
    L2 = 320
    x2 = jax.random.normal(kx2, (B, C, L2), dtype=jnp.float32)
    out2 = jax.block_until_ready(
        channel_attention(x2, w1, w2, x_tile_bytes=16 * 1024))
    ref2 = channel_attention_ref(x2, w1, w2)
    assert out2.shape == (B, C, 1), out2.shape
    assert jnp.allclose(out2, ref2, atol=1e-5, rtol=1e-5), "mismatch vs reference (tiled)"

    print("KERNEL_OK")
</pallas_src>

<mosaic_0001>
module attributes {stable_mosaic.version = 11 : i64} {
  func.func @_channel_attention_kernel(%arg0: i32, %arg1: i32, %arg2: memref<2x32x16xf32, #tpu.memory_space<vmem>>, %arg3: memref<32x2xf32, #tpu.memory_space<vmem>>, %arg4: memref<2x32xf32, #tpu.memory_space<vmem>>, %arg5: memref<2x32xf32, #tpu.memory_space<vmem>>, %arg6: memref<2x32xf32, #tpu.memory_space<vmem>>, %arg7: memref<2x32xf32, #tpu.memory_space<vmem>>) attributes {dimension_semantics = [#tpu.dimension_semantics<parallel>, #tpu.dimension_semantics<arbitrary>], iteration_bounds = array<i64: 1, 1>, scalar_prefetch = 0 : i64, scratch_operands = 2 : i64, tpu.core_type = #tpu.core_type<tc>, window_params = [{transform_indices = @transform_0, window_bounds = array<i64: 2, 32, 16>}, {pipeline_mode = #tpu.pipeline_mode<synchronous>, transform_indices = @transform_1, window_bounds = array<i64: 32, 2>}, {pipeline_mode = #tpu.pipeline_mode<synchronous>, transform_indices = @transform_2, window_bounds = array<i64: 2, 32>}, {transform_indices = @transform_3, window_bounds = array<i64: 2, 32>}]} {
    %c0_i32 = arith.constant 0 : i32
    %0 = arith.cmpi eq, %arg1, %c0_i32 : i32
    %1 = arith.extui %0 : i1 to i32
    %c0_i32_0 = arith.constant 0 : i32
    %2 = arith.cmpi ne, %1, %c0_i32_0 : i32
    scf.if %2 {
      %cst_14 = arith.constant 0.000000e+00 : f32
      %15 = vector.broadcast %cst_14 : f32 to vector<2x32xf32>
      %c0_15 = arith.constant 0 : index
      %c0_16 = arith.constant 0 : index
      %16 = vector.load %arg6[%c0_15, %c0_16] : memref<2x32xf32, #tpu.memory_space<vmem>>, vector<2x32xf32>
      tpu.vector_store %arg6[%c0_15, %c0_16], %15 {strides = array<i32>} : memref<2x32xf32, #tpu.memory_space<vmem>>, vector<2x32xf32>,
      %cst_17 = arith.constant 0xFF800000 : f32
      %17 = vector.broadcast %cst_17 : f32 to vector<2x32xf32>
      %c0_18 = arith.constant 0 : index
      %c0_19 = arith.constant 0 : index
      %18 = vector.load %arg7[%c0_18, %c0_19] : memref<2x32xf32, #tpu.memory_space<vmem>>, vector<2x32xf32>
      tpu.vector_store %arg7[%c0_18, %c0_19], %17 {strides = array<i32>} : memref<2x32xf32, #tpu.memory_space<vmem>>, vector<2x32xf32>,
    } else {
    }
    %c0 = arith.constant 0 : index
    %c0_1 = arith.constant 0 : index
    %c0_2 = arith.constant 0 : index
    %3 = vector.load %arg2[%c0, %c0_1, %c0_2] : memref<2x32x16xf32, #tpu.memory_space<vmem>>, vector<2x32x16xf32>
    %c0_3 = arith.constant 0 : index
    %c0_4 = arith.constant 0 : index
    %4 = vector.load %arg6[%c0_3, %c0_4] : memref<2x32xf32, #tpu.memory_space<vmem>>, vector<2x32xf32>
    %cst = arith.constant dense<0.000000e+00> : vector<2x32xf32>
    %5 = vector.multi_reduction <add>, %3, %cst [2] : vector<2x32x16xf32> to vector<2x32xf32>
    %6 = arith.addf %4, %5 : vector<2x32xf32>
    %c0_5 = arith.constant 0 : index
    %c0_6 = arith.constant 0 : index
    %7 = vector.load %arg6[%c0_5, %c0_6] : memref<2x32xf32, #tpu.memory_space<vmem>>, vector<2x32xf32>
    tpu.vector_store %arg6[%c0_5, %c0_6], %6 {strides = array<i32>} : memref<2x32xf32, #tpu.memory_space<vmem>>, vector<2x32xf32>,
    %c0_7 = arith.constant 0 : index
    %c0_8 = arith.constant 0 : index
    %8 = vector.load %arg7[%c0_7, %c0_8] : memref<2x32xf32, #tpu.memory_space<vmem>>, vector<2x32xf32>
    %cst_9 = arith.constant dense<0xFF800000> : vector<2x32xf32>
    %9 = vector.multi_reduction <maximumf>, %3, %cst_9 [2] : vector<2x32x16xf32> to vector<2x32xf32>
    %10 = arith.maximumf %8, %9 : vector<2x32xf32>
    %c0_10 = arith.constant 0 : index
    %c0_11 = arith.constant 0 : index
    %11 = vector.load %arg7[%c0_10, %c0_11] : memref<2x32xf32, #tpu.memory_space<vmem>>, vector<2x32xf32>
    tpu.vector_store %arg7[%c0_10, %c0_11], %10 {strides = array<i32>} : memref<2x32xf32, #tpu.memory_space<vmem>>, vector<2x32xf32>,
    %c0_i32_12 = arith.constant 0 : i32
    %12 = arith.cmpi eq, %arg1, %c0_i32_12 : i32
    %13 = arith.extui %12 : i1 to i32
    %c0_i32_13 = arith.constant 0 : i32
    %14 = arith.cmpi ne, %13, %c0_i32_13 : i32
    scf.if %14 {
      %c0_14 = arith.constant 0 : index
      %c0_15 = arith.constant 0 : index
      %15 = vector.load %arg6[%c0_14, %c0_15] : memref<2x32xf32, #tpu.memory_space<vmem>>, vector<2x32xf32>
      %cst_16 = arith.constant 6.250000e-02 : f32
      %16 = vector.broadcast %cst_16 : f32 to vector<2x32xf32>
      %17 = arith.mulf %15, %16 : vector<2x32xf32>
      %c0_17 = arith.constant 0 : index
      %c0_18 = arith.constant 0 : index
      %18 = vector.load %arg7[%c0_17, %c0_18] : memref<2x32xf32, #tpu.memory_space<vmem>>, vector<2x32xf32>
      %c0_19 = arith.constant 0 : index
      %c0_20 = arith.constant 0 : index
      %19 = vector.load %arg3[%c0_19, %c0_20] : memref<32x2xf32, #tpu.memory_space<vmem>>, vector<32x2xf32>
      %cst_21 = arith.constant dense<0.000000e+00> : vector<2x2xf32>
      %20 = tpu.matmul %17, %19, %cst_21 {dimension_numbers = #tpu.dot_dimension_numbers<[1], [0], [0], [1], [0, 0, 1, 1], [], []>} : vector<2x32xf32>, vector<32x2xf32>, vector<2x2xf32> -> vector<2x2xf32>
      %cst_22 = arith.constant 0.000000e+00 : f32
      %21 = vector.broadcast %cst_22 : f32 to vector<2x2xf32>
      %22 = arith.maximumf %20, %21 : vector<2x2xf32>
      %cst_23 = arith.constant dense<0.000000e+00> : vector<2x2xf32>
      %23 = tpu.matmul %18, %19, %cst_23 {dimension_numbers = #tpu.dot_dimension_numbers<[1], [0], [0], [1], [0, 0, 1, 1], [], []>} : vector<2x32xf32>, vector<32x2xf32>, vector<2x2xf32> -> vector<2x2xf32>
      %cst_24 = arith.constant 0.000000e+00 : f32
      %24 = vector.broadcast %cst_24 : f32 to vector<2x2xf32>
      %25 = arith.maximumf %23, %24 : vector<2x2xf32>
      %26 = arith.addf %22, %25 : vector<2x2xf32>
      %c0_25 = arith.constant 0 : index
      %c0_26 = arith.constant 0 : index
      %27 = vector.load %arg4[%c0_25, %c0_26] : memref<2x32xf32, #tpu.memory_space<vmem>>, vector<2x32xf32>
      %28 = vector.extract_strided_slice %26 {offsets = [0, 0], sizes = [2, 1], strides = [1, 1]} : vector<2x2xf32> to vector<2x1xf32>
      %29 = vector.extract_strided_slice %27 {offsets = [0, 0], sizes = [1, 32], strides = [1, 1]} : vector<2x32xf32> to vector<1x32xf32>
      %30 = vector.broadcast %28 : vector<2x1xf32> to vector<2x32xf32>
      %31 = vector.broadcast %29 : vector<1x32xf32> to vector<2x32xf32>
      %32 = arith.mulf %30, %31 : vector<2x32xf32>
      %33 = vector.extract_strided_slice %26 {offsets = [0, 1], sizes = [2, 1], strides = [1, 1]} : vector<2x2xf32> to vector<2x1xf32>
      %34 = vector.extract_strided_slice %27 {offsets = [1, 0], sizes = [1, 32], strides = [1, 1]} : vector<2x32xf32> to vector<1x32xf32>
      %35 = vector.broadcast %33 : vector<2x1xf32> to vector<2x32xf32>
      %36 = vector.broadcast %34 : vector<1x32xf32> to vector<2x32xf32>
      %37 = arith.mulf %35, %36 : vector<2x32xf32>
      %38 = arith.addf %32, %37 : vector<2x32xf32>
      %39 = arith.negf %38 : vector<2x32xf32>
      %40 = math.exp %39 : vector<2x32xf32>
      %cst_27 = arith.constant 1.000000e+00 : f32
      %41 = vector.broadcast %cst_27 : f32 to vector<2x32xf32>
      %42 = arith.addf %41, %40 : vector<2x32xf32>
      %43 = arith.divf %41, %42 : vector<2x32xf32>
      %c0_28 = arith.constant 0 : index
      %c0_29 = arith.constant 0 : index
      %44 = vector.load %arg5[%c0_28, %c0_29] : memref<2x32xf32, #tpu.memory_space<vmem>>, vector<2x32xf32>
      tpu.vector_store %arg5[%c0_28, %c0_29], %43 {strides = array<i32>} : memref<2x32xf32, #tpu.memory_space<vmem>>, vector<2x32xf32>,
    } else {
    }
    return
  }
  func.func @transform_0(%arg0: i32, %arg1: i32) -> (i32, i32, i32) {
    %c0_i32 = arith.constant 0 : i32
    %c0_i32_0 = arith.constant 0 : i32
    return %arg0, %c0_i32, %arg1 : i32, i32, i32
  }
  func.func @transform_1(%arg0: i32, %arg1: i32) -> (i32, i32) {
    %c0_i32 = arith.constant 0 : i32
    %c0_i32_0 = arith.constant 0 : i32
    %c0_i32_1 = arith.constant 0 : i32
    return %c0_i32, %c0_i32_0 : i32, i32
  }
  func.func @transform_2(%arg0: i32, %arg1: i32) -> (i32, i32) {
    %c0_i32 = arith.constant 0 : i32
    %c0_i32_0 = arith.constant 0 : i32
    %c0_i32_1 = arith.constant 0 : i32
    return %c0_i32, %c0_i32_0 : i32, i32
  }
  func.func @transform_3(%arg0: i32, %arg1: i32) -> (i32, i32) {
    %c0_i32 = arith.constant 0 : i32
    %c0_i32_0 = arith.constant 0 : i32
    return %arg0, %c0_i32 : i32, i32
  }
}

</mosaic_0001>

<llo_original>
// kernel: tpu_custom_call.1
$region0: #{tpu_custom_call.1}
  #allocation0 [shape = 'u32[]', space=smem, size = 0x4, offset = 0x4, fixed_abs, tag = 'smem constant byte address 0x4 - core index']
  #allocation1 [shape = 'u32[144,128]{1,0:T(1,128)}', space=vmem, size = 0x12000, scoped, tag = 'internal scratch']
  #allocation2 [shape = 'f32[2,32]{1,0:T(2,128)}', space=vmem, size = 0x400, scoped, tag = 'scratch operand']
  #allocation3 [shape = 'f32[2,32]{1,0:T(2,128)}', space=vmem, size = 0x400, scoped, tag = 'scratch operand']
  %s0 = inlined_call_operand.vmem [shape: f32[2,32,16], index: 0, kind: input, shape index: {}]
  %s1 = inlined_call_operand.vmem [shape: f32[32,2], index: 1, kind: input, shape index: {}]
  %s2 = inlined_call_operand.vmem [shape: f32[2,32], index: 2, kind: input, shape index: {}]
  %s3 = inlined_call_operand.hbm [shape: f32[2,32], index: 3, kind: output, shape index: {}]
  %s4 = sld [smem:[#allocation0]]
  $region30: #{tpu_custom_call.1} parent=0
    _
  %s6 = ssub.s32 1, %s4
  %s7 = scalar_select 0, %s6, %s4
  $region1: #{tpu_custom_call.1} parent=0
    #allocation4 [shape = 'u8[1024]{0}', space=vmem, size = 0x400, scoped, tag = 'output window, operand 0, single buffered']
    #allocation5 [shape = 's32[1]{0}', space=sflag, size = 0x4, scoped, tag = 'scoped memory for tpu_custom_call.1']
    %8 = vsyncpa [#allocation5], 0
    // Predicated region
    $region2: #{tpu_custom_call.1} parent=1 // pred_check
      _
    $region3: #{tpu_custom_call.1} parent=1 // pred_check_branch
      %10 = sbr.rel (0) target = $region5
    $region4: #{tpu_custom_call.1} parent=1 // pred_region
      _
    $region5: #{tpu_custom_call.1} parent=1 // pred_fallthru
      _
    // Predicated region
    $region6: #{tpu_custom_call.1} parent=1 // pred_check
      _
    $region7: #{tpu_custom_call.1} parent=1 // pred_check_branch
      %12 = sbr.rel (0) target = $region9
    $region8: #{tpu_custom_call.1} parent=1 // pred_region
      _
    $region9: #{tpu_custom_call.1} parent=1 // pred_fallthru
      _
    // Predicated region
    $region10: #{tpu_custom_call.1} parent=1 // pred_check
      _
    $region11: #{tpu_custom_call.1} parent=1 // pred_check_branch
      %14 = sbr.rel (0) target = $region13
    $region12: #{tpu_custom_call.1} parent=1 // pred_region
      _
    $region13: #{tpu_custom_call.1} parent=1 // pred_fallthru
      _
    %p15 = scmp.eq.s32.totalorder 0, 0
    // Predicated region
    $region14: #{tpu_custom_call.1} parent=1 // pred_check
      %p16 = pneg %p15
    $region15: #{tpu_custom_call.1} parent=1 // pred_check_branch
      %18 = sbr.rel (%p16) target = $region17
    $region16: #{tpu_custom_call.1} parent=1 // pred_region
      %vm19 = vcmask 254976
      %20 = vst.msk [vmem:[#allocation2] sm:$0x3] %vm19, 0.0
      %21 = vst.msk [vmem:[#allocation3] sm:$0x3] %vm19, -inf
    $region17: #{tpu_custom_call.1} parent=1 // pred_fallthru
      _
    %v22 = vld [vmem:[%s0] sm:$0xff]
    %v23 = vld [vmem:[%s0 + $0x8] sm:$0xff]
    %v24 = vld [vmem:[%s0 + $0x10] sm:$0xff]
    %v25 = vld [vmem:[%s0 + $0x18] sm:$0xff]
    %v26 = vld [vmem:[%s0 + $0x20] sm:$0xff]
    %v27 = vld [vmem:[%s0 + $0x28] sm:$0xff]
    %v28 = vld [vmem:[%s0 + $0x30] sm:$0xff]
    %v29 = vld [vmem:[%s0 + $0x38] sm:$0xff]
    %v30 = vld [vmem:[#allocation2] sm:$0x3]
    %vm31 = vcmask 130048
    %v32 = vsel %vm31, %v22, 0.0
    %33 = vadd.xlane.f32.xlu0 %v32
    %v34 = vpop.xlane.xlu0 %33
    %v35 = vsel %vm31, %v23, 0.0
    %36 = vadd.xlane.f32.xlu0 %v35
    %v37 = vpop.xlane.xlu0 %36
    %v38 = vsel %vm31, %v24, 0.0
    %39 = vadd.xlane.f32.xlu0 %v38
    %v40 = vpop.xlane.xlu0 %39
    %v41 = vsel %vm31, %v25, 0.0
    %42 = vadd.xlane.f32.xlu0 %v41
    %v43 = vpop.xlane.xlu0 %42
    %v44 = vsel %vm31, %v26, 0.0
    %45 = vadd.xlane.f32.xlu0 %v44
    %v46 = vpop.xlane.xlu0 %45
    %v47 = vsel %vm31, %v27, 0.0
    %48 = vadd.xlane.f32.xlu0 %v47
    %v49 = vpop.xlane.xlu0 %48
    %v50 = vsel %vm31, %v28, 0.0
    %51 = vadd.xlane.f32.xlu0 %v50
    %v52 = vpop.xlane.xlu0 %51
    %v53 = vsel %vm31, %v29, 0.0
    %54 = vadd.xlane.f32.xlu0 %v53
    %v55 = vpop.xlane.xlu0 %54
    %v64 = vlaneseq
    %v65 = vand.u32 %v64, 127
    %v66 = vlaneseq
    %v67 = vshrl.u32 %v66, 7
    %v68 = vsub.s32 %v65, %v67
    %v69 = vrot.slane %v34, %v68
    %v70 = vadd.s32 %v65, 4294967288
    %v71 = vlaneseq
    %v72 = vshrl.u32 %v71, 7
    %v73 = vsub.s32 %v70, %v72
    %v74 = vrot.slane %v37, %v73
    %vm75 = vcmask 130112
    %v76 = vsel %vm75, %v74, %v69
    %v77 = vadd.s32 %v65, 4294967280
    %v78 = vlaneseq
    %v79 = vshrl.u32 %v78, 7
    %v80 = vsub.s32 %v77, %v79
    %v81 = vrot.slane %v40, %v80
    %vm82 = vcmask 195712
    %v83 = vsel %vm82, %v81, %v76
    %v84 = vadd.s32 %v65, 4294967272
    %v85 = vlaneseq
    %v86 = vshrl.u32 %v85, 7
    %v87 = vsub.s32 %v84, %v86
    %v88 = vrot.slane %v43, %v87
    %vm89 = vcmask 261312
    %v90 = vsel %vm89, %v88, %v83
    %v91 = vlaneseq
    %v92 = vshrl.u32 %v91, 7
    %v93 = vsub.s32 %v65, %v92
    %v94 = vrot.slane %v46, %v93
    %v95 = vlaneseq
    %v96 = vshrl.u32 %v95, 7
    %v97 = vsub.s32 %v70, %v96
    %v98 = vrot.slane %v49, %v97
    %v99 = vsel %vm75, %v98, %v94
    %v100 = vlaneseq
    %v101 = vshrl.u32 %v100, 7
    %v102 = vsub.s32 %v77, %v101
    %v103 = vrot.slane %v52, %v102
    %v104 = vsel %vm82, %v103, %v99
    %v105 = vlaneseq
    %v106 = vshrl.u32 %v105, 7
    %v107 = vsub.s32 %v84, %v106
    %v108 = vrot.slane %v55, %v107
    %v109 = vsel %vm89, %v108, %v104
    %vm110 = vcmask 1041409
    %v111 = vsel %vm110, %v109, %v90
    %v113 = vadd.f32 %v30, %v111
    %vm114 = vcmask 254976
    %115 = vst.msk [vmem:[#allocation2] sm:$0x3] %vm114, %v113
    %v116 = vld [vmem:[#allocation3] sm:$0x3]
    %v117 = vsel %vm31, %v22, -inf
    %118 = vmax.xlane.f32.xlu0 %v117
    %v119 = vpop.xlane.xlu0 %118
    %v120 = vsel %vm31, %v23, -inf
    %121 = vmax.xlane.f32.xlu0 %v120
    %v122 = vpop.xlane.xlu0 %121
    %v123 = vsel %vm31, %v24, -inf
    %124 = vmax.xlane.f32.xlu0 %v123
    %v125 = vpop.xlane.xlu0 %124
    %v126 = vsel %vm31, %v25, -inf
    %127 = vmax.xlane.f32.xlu0 %v126
    %v128 = vpop.xlane.xlu0 %127
    %v129 = vsel %vm31, %v26, -inf
    %130 = vmax.xlane.f32.xlu0 %v129
    %v131 = vpop.xlane.xlu0 %130
    %v132 = vsel %vm31, %v27, -inf
    %133 = vmax.xlane.f32.xlu0 %v132
    %v134 = vpop.xlane.xlu0 %133
    %v135 = vsel %vm31, %v28, -inf
    %136 = vmax.xlane.f32.xlu0 %v135
    %v137 = vpop.xlane.xlu0 %136
    %v138 = vsel %vm31, %v29, -inf
    %139 = vmax.xlane.f32.xlu0 %v138
    %v140 = vpop.xlane.xlu0 %139
    %v149 = vlaneseq
    %v150 = vshrl.u32 %v149, 7
    %v151 = vsub.s32 %v65, %v150
    %v152 = vrot.slane %v119, %v151
    %v153 = vlaneseq
    %v154 = vshrl.u32 %v153, 7
    %v155 = vsub.s32 %v70, %v154
    %v156 = vrot.slane %v122, %v155
    %v157 = vsel %vm75, %v156, %v152
    %v158 = vlaneseq
    %v159 = vshrl.u32 %v158, 7
    %v160 = vsub.s32 %v77, %v159
    %v161 = vrot.slane %v125, %v160
    %v162 = vsel %vm82, %v161, %v157
    %v163 = vlaneseq
    %v164 = vshrl.u32 %v163, 7
    %v165 = vsub.s32 %v84, %v164
    %v166 = vrot.slane %v128, %v165
    %v167 = vsel %vm89, %v166, %v162
    %v168 = vlaneseq
    %v169 = vshrl.u32 %v168, 7
    %v170 = vsub.s32 %v65, %v169
    %v171 = vrot.slane %v131, %v170
    %v172 = vlaneseq
    %v173 = vshrl.u32 %v172, 7
    %v174 = vsub.s32 %v70, %v173
    %v175 = vrot.slane %v134, %v174
    %v176 = vsel %vm75, %v175, %v171
    %v177 = vlaneseq
    %v178 = vshrl.u32 %v177, 7
    %v179 = vsub.s32 %v77, %v178
    %v180 = vrot.slane %v137, %v179
    %v181 = vsel %vm82, %v180, %v176
    %v182 = vlaneseq
    %v183 = vshrl.u32 %v182, 7
    %v184 = vsub.s32 %v84, %v183
    %v185 = vrot.slane %v140, %v184
    %v186 = vsel %vm89, %v185, %v181
    %v187 = vsel %vm110, %v186, %v167
    %v189 = vmax.f32 %v116, %v187
    %190 = vst.msk [vmem:[#allocation3] sm:$0x3] %vm114, %v189
    // Predicated region
    $region18: #{tpu_custom_call.1} parent=1 // pred_check
      %p191 = pneg %p15
    $region19: #{tpu_custom_call.1} parent=1 // pred_check_branch
      %193 = sbr.rel (%p191) target = $region21
    $region20: #{tpu_custom_call.1} parent=1 // pred_region
      %v194 = vld [vmem:[#allocation2] sm:$0x3]
      %v195 = vmul.f32 %v194, 0.0625
      %v196 = vld [vmem:[#allocation3] sm:$0x3]
      %v197 = vld [vmem:[%s1] sm:$0xff]
      %v198 = vld [vmem:[%s1 + $0x8] sm:$0xff]
      %v199 = vld [vmem:[%s1 + $0x10] sm:$0xff]
      %v200 = vld [vmem:[%s1 + $0x18] sm:$0xff]
      %vm201 = vcmask 261120
      %v203 = vsel %vm201, %v195, 0
      %205 = vmatprep.subr.mxu0 0.0
      %206 = vmatpush1.msra.mxu0 0.0
      %207 = vmatprep.subr.mxu0 0.0
      %208 = vmatpush1.msra.mxu0 0.0
      %209 = vmatprep.subr.mxu0 0.0
      %210 = vmatpush1.msra.mxu0 0.0
      %211 = vmatprep.subr.mxu0 0.0
      %212 = vmatpush1.msra.mxu0 0.0
      %213 = vmatprep.subr.mxu0 0.0
      %214 = vmatpush1.msra.mxu0 0.0
      %215 = vmatprep.subr.mxu0 0.0
      %216 = vmatpush1.msra.mxu0 0.0
      %217 = vmatprep.subr.mxu0 0.0
      %218 = vmatpush1.msra.mxu0 0.0
      %219 = vmatprep.subr.mxu0 0.0
      %220 = vmatpush1.msra.mxu0 0.0
      %221 = vmatprep.subr.mxu0 0.0
      %222 = vmatpush1.msra.mxu0 0.0
      %223 = vmatprep.subr.mxu0 0.0
      %224 = vmatpush1.msra.mxu0 0.0
      %225 = vmatprep.subr.mxu0 0.0
      %226 = vmatpush1.msra.mxu0 0.0
      %227 = vmatprep.subr.mxu0 0.0
      %228 = vmatpush1.msra.mxu0 0.0
      %229 = vmatprep.subr.mxu0 0.0
      %230 = vmatpush1.msra.mxu0 %v200
      %231 = vmatprep.subr.mxu0 0.0
      %232 = vmatpush1.msra.mxu0 %v199
      %233 = vmatprep.subr.mxu0 0.0
      %234 = vmatpush1.msra.mxu0 %v198
      %235 = vmatprep.subr.mxu0 0.0
      %236 = vmatpush1.msra.mxu0 %v197
      %237 = vmatprep.subr.mxu0 0.0
      %238 = vmatpush2.msra.mxu0 0.0
      %239 = vmatprep.subr.mxu0 0.0
      %240 = vmatpush2.msra.mxu0 0.0
      %241 = vmatprep.subr.mxu0 0.0
      %242 = vmatpush2.msra.mxu0 0.0
      %243 = vmatprep.subr.mxu0 0.0
      %244 = vmatpush2.msra.mxu0 0.0
      %245 = vmatprep.subr.mxu0 0.0
      %246 = vmatpush2.msra.mxu0 0.0
      %247 = vmatprep.subr.mxu0 0.0
      %248 = vmatpush2.msra.mxu0 0.0
      %249 = vmatprep.subr.mxu0 0.0
      %250 = vmatpush2.msra.mxu0 0.0
      %251 = vmatprep.subr.mxu0 0.0
      %252 = vmatpush2.msra.mxu0 0.0
      %253 = vmatprep.subr.mxu0 0.0
      %254 = vmatpush2.msra.mxu0 0.0
      %255 = vmatprep.subr.mxu0 0.0
      %256 = vmatpush2.msra.mxu0 0.0
      %257 = vmatprep.subr.mxu0 0.0
      %258 = vmatpush2.msra.mxu0 0.0
      %259 = vmatprep.subr.mxu0 0.0
      %260 = vmatpush2.msra.mxu0 0.0
      %261 = vmatprep.subr.mxu0 0.0
      %262 = vmatpush2.msra.mxu0 0.0
      %263 = vmatprep.subr.mxu0 0.0
      %264 = vmatpush2.msra.mxu0 0.0
      %265 = vmatprep.subr.mxu0 0.0
      %266 = vmatpush2.msra.mxu0 0.0
      %267 = vmatprep.subr.mxu0 0.0
      %268 = vmatpush2.msra.mxu0 0.0
      %269 = vmatprep.mubr.f32.mxu0 0.0
      %270 = vmatmul.mubr.f32.gmra.mxu0 %v203
      %v271 = vpop.f32.mrf.mxu0
      %v272 = vadd.f32 0.0, %v271
      %v273 = vpop.f32.mrf.mxu0
      %274 = vdwg.mxu0
      %v275 = vmax.f32 %v272, 0.0
      %v277 = vsel %vm201, %v196, 0
      %279 = vmatprep.subr.mxu0 0.0
      %280 = vmatpush1.msra.mxu0 0.0
      %281 = vmatprep.subr.mxu0 0.0
      %282 = vmatpush1.msra.mxu0 0.0
      %283 = vmatprep.subr.mxu0 0.0
      %284 = vmatpush1.msra.mxu0 0.0
      %285 = vmatprep.subr.mxu0 0.0
      %286 = vmatpush1.msra.mxu0 0.0
      %287 = vmatprep.subr.mxu0 0.0
      %288 = vmatpush1.msra.mxu0 0.0
      %289 = vmatprep.subr.mxu0 0.0
      %290 = vmatpush1.msra.mxu0 0.0
      %291 = vmatprep.subr.mxu0 0.0
      %292 = vmatpush1.msra.mxu0 0.0
      %293 = vmatprep.subr.mxu0 0.0
      %294 = vmatpush1.msra.mxu0 0.0
      %295 = vmatprep.subr.mxu0 0.0
      %296 = vmatpush1.msra.mxu0 0.0
      %297 = vmatprep.subr.mxu0 0.0
      %298 = vmatpush1.msra.mxu0 0.0
      %299 = vmatprep.subr.mxu0 0.0
      %300 = vmatpush1.msra.mxu0 0.0
      %301 = vmatprep.subr.mxu0 0.0
      %302 = vmatpush1.msra.mxu0 0.0
      %303 = vmatprep.subr.mxu0 0.0
      %304 = vmatpush1.msra.mxu0 %v200
      %305 = vmatprep.subr.mxu0 0.0
      %306 = vmatpush1.msra.mxu0 %v199
      %307 = vmatprep.subr.mxu0 0.0
      %308 = vmatpush1.msra.mxu0 %v198
      %309 = vmatprep.subr.mxu0 0.0
      %310 = vmatpush1.msra.mxu0 %v197
      %311 = vmatprep.subr.mxu0 0.0
      %312 = vmatpush2.msra.mxu0 0.0
      %313 = vmatprep.subr.mxu0 0.0
      %314 = vmatpush2.msra.mxu0 0.0
      %315 = vmatprep.subr.mxu0 0.0
      %316 = vmatpush2.msra.mxu0 0.0
      %317 = vmatprep.subr.mxu0 0.0
      %318 = vmatpush2.msra.mxu0 0.0
      %319 = vmatprep.subr.mxu0 0.0
      %320 = vmatpush2.msra.mxu0 0.0
      %321 = vmatprep.subr.mxu0 0.0
      %322 = vmatpush2.msra.mxu0 0.0
      %323 = vmatprep.subr.mxu0 0.0
      %324 = vmatpush2.msra.mxu0 0.0
      %325 = vmatprep.subr.mxu0 0.0
      %326 = vmatpush2.msra.mxu0 0.0
      %327 = vmatprep.subr.mxu0 0.0
      %328 = vmatpush2.msra.mxu0 0.0
      %329 = vmatprep.subr.mxu0 0.0
      %330 = vmatpush2.msra.mxu0 0.0
      %331 = vmatprep.subr.mxu0 0.0
      %332 = vmatpush2.msra.mxu0 0.0
      %333 = vmatprep.subr.mxu0 0.0
      %334 = vmatpush2.msra.mxu0 0.0
      %335 = vmatprep.subr.mxu0 0.0
      %336 = vmatpush2.msra.mxu0 0.0
      %337 = vmatprep.subr.mxu0 0.0
      %338 = vmatpush2.msra.mxu0 0.0
      %339 = vmatprep.subr.mxu0 0.0
      %340 = vmatpush2.msra.mxu0 0.0
      %341 = vmatprep.subr.mxu0 0.0
      %342 = vmatpush2.msra.mxu0 0.0
      %343 = vmatprep.mubr.f32.mxu0 0.0
      %344 = vmatmul.mubr.f32.gmra.mxu0 %v277
      %v345 = vpop.f32.mrf.mxu0
      %v346 = vadd.f32 0.0, %v345
      %v347 = vpop.f32.mrf.mxu0
      %348 = vdwg.mxu0
      %v349 = vmax.f32 %v346, 0.0
      %v350 = vadd.f32 %v275, %v349
      %v351 = vld [vmem:[%s2] sm:$0x3]
      %353 = vset.pattern.permute.xlu0 0
      %354 = vperm.xlu0 %353, %v350
      %v355 = vpop.permute.xlu0 %354
      %v357 = vlaneseq
      %v358 = vshrl.u32 %v357, 7
      %v359 = vsub.s32 0, %v358
      %v360 = vrot.slane %v351, %v359
      %v361 = vmul.f32 %v355, %v360
      %362 = vset.pattern.permute.xlu0 1
      %363 = vperm.xlu0 %362, %v350
      %v364 = vpop.permute.xlu0 %363
      %v366 = vlaneseq
      %v367 = vshrl.u32 %v366, 7
      %v368 = vsub.s32 1, %v367
      %v369 = vrot.slane %v351, %v368
      %v370 = vmul.f32 %v364, %v369
      %v371 = vadd.f32 %v361, %v370
      %v372 = vxor.u32 %v371, 2147483648
      %v373 = vmul.f32 %v372, 1.442695
      %v374 = vpow.pop %v373
      %v375 = vadd.f32 %v374, 1.0
      %v376 = vrcp.pop %v375
      %v377 = vmul.f32 1.0, %v376
      %378 = vst.msk [vmem:[#allocation4] sm:$0x3] %vm114, %v377
    $region21: #{tpu_custom_call.1} parent=1 // pred_fallthru
      _
    // Predicated region
    $region22: #{tpu_custom_call.1} parent=1 // pred_check
      _
    $region23: #{tpu_custom_call.1} parent=1 // pred_check_branch
      %380 = sbr.rel (0) target = $region25
    $region24: #{tpu_custom_call.1} parent=1 // pred_region
      %s382 = ssub.s32 32, 32
      %383 = vsyncadd [#allocation5], %s382
      %s385 = sshll.u32 [#allocation4], 4
      %s386 = int_to_ptr.vmem [resolvable:$true] %s385
      %388 = dma.vmem_to_hbm [thread:$0]  %s386, 32, %s3, [#allocation5]
    $region25: #{tpu_custom_call.1} parent=1 // pred_fallthru
      _
    // Predicated region
    $region26: #{tpu_custom_call.1} parent=1 // pred_check
      _
    $region27: #{tpu_custom_call.1} parent=1 // pred_check_branch
      %390 = sbr.rel (0) target = $region29
    $region28: #{tpu_custom_call.1} parent=1 // pred_region
      %391 = dma.done [#allocation5], 32
    $region29: #{tpu_custom_call.1} parent=1 // pred_fallthru
      _
    %392 = vsyncpa [#allocation5], 1

</llo_original>
